<compile_context>
chip_gen: v7x
topology: tpu7x:2x2x1
jax: 0.10.0
libtpu: 0.0.40
codegen_flags: <defaults>
</compile_context>

<pallas_src>
import jax
import jax.numpy as jnp
import numpy as np
from jax import lax
from jax.experimental import pallas as pl
from jax.experimental.pallas import tpu as pltpu


def dense_kernel(lengths_ref,          # SMEM (B,)   int32  (scalar prefetch, pre-clamped to <= S)
                 x_ref,                # VMEM (1, L, TS, F) f32
                 aggr_w_ref,           # SMEM (L,)   f32    (Conv1d L->1, k=1, no bias)
                 w1t_ref, b1_ref,      # VMEM (F, H), (1, H)   pre-transposed
                 w2t_ref, b2_ref,      # VMEM (H, H), (1, H)   pre-transposed
                 mean_ref,             # VMEM out (1, 1, H)  length-masked temporal mean
                 acc_ref):             # VMEM scratch (1, H) f32 running masked sum
    b = pl.program_id(0)
    s = pl.program_id(1)
    n_s = pl.num_programs(1)
    L = x_ref.shape[1]
    TS = x_ref.shape[2]

    @pl.when(s == 0)
    def _():
        acc_ref[...] = jnp.zeros_like(acc_ref)

    # --- aggr: Conv1d(in=L, out=1, k=1, bias=False) == weighted sum over layers.
    # Read one (TS, F) layer slab at a time to keep vreg live ranges small.
    agg = aggr_w_ref[0] * x_ref[0, 0]
    for l in range(1, L):                                # L is small & static -> unrolled
        agg = agg + aggr_w_ref[l] * x_ref[0, l]          # (TS, F)

    # --- cnn: Conv1d(F -> H, k=1) + ReLU (weights pre-transposed; no in-kernel .T)
    h1 = jnp.dot(agg, w1t_ref[...], preferred_element_type=jnp.float32) + b1_ref[...]
    h1 = jnp.maximum(h1, 0.0)                            # (TS, H)

    # --- cnn2: Conv1d(H -> H, k=1) + ReLU
    h2 = jnp.dot(h1, w2t_ref[...], preferred_element_type=jnp.float32) + b2_ref[...]
    h2 = jnp.maximum(h2, 0.0)                            # (TS, H)

    # --- length-masked sum over this tile's positions, as a skinny MXU matmul
    length = lengths_ref[b]
    pos = s * TS + lax.broadcasted_iota(jnp.int32, (1, TS), 1)
    mask = (pos < length).astype(jnp.float32)            # (1, TS)
    acc_ref[...] += jnp.dot(mask, h2, preferred_element_type=jnp.float32)

    @pl.when(s == n_s - 1)
    def _():
        denom = jnp.maximum(length, 1).astype(jnp.float32)   # guard length == 0
        mean_ref[0] = (acc_ref[...] / denom).astype(mean_ref.dtype)


def dense_forward(x, lengths, params, *, seq_tile=8):
    """x: (B, L, S, F) f32, lengths: (B,) int32 -> logits (B, LBL) f32."""
    B, L, S, F = x.shape
    aggr_w, w1, b1, w2, b2, w3, b3 = params
    H = w1.shape[0]

    ts = min(seq_tile, S)
    if S % ts != 0:
        ts = S  # TODO(synk): pad S up to a tile multiple for sequence lengths not divisible by the tile
    n_s = S // ts

    # correctness guard: clamp lengths to the padded sequence length
    lengths = jnp.minimum(lengths.astype(jnp.int32), S)

    grid_spec = pltpu.PrefetchScalarGridSpec(
        num_scalar_prefetch=1,            # lengths -> SMEM
        grid=(B, n_s),                    # batch parallel, seq-tile reduction last
        in_specs=[
            pl.BlockSpec((1, L, ts, F), lambda b, s, lens: (b, 0, s, 0)),
            pl.BlockSpec(memory_space=pltpu.MemorySpace.SMEM),   # aggr_w (L,)
            pl.BlockSpec((F, H), lambda b, s, lens: (0, 0)),
            pl.BlockSpec((1, H), lambda b, s, lens: (0, 0)),
            pl.BlockSpec((H, H), lambda b, s, lens: (0, 0)),
            pl.BlockSpec((1, H), lambda b, s, lens: (0, 0)),
        ],
        out_specs=pl.BlockSpec((1, 1, H), lambda b, s, lens: (b, 0, 0)),
        scratch_shapes=[pltpu.VMEM((1, H), jnp.float32)],
    )

    mean = pl.pallas_call(
        dense_kernel,
        out_shape=jax.ShapeDtypeStruct((B, 1, H), jnp.float32),
        grid_spec=grid_spec,
        compiler_params=pltpu.CompilerParams(
            dimension_semantics=("parallel", "arbitrary")),
    )(lengths, x, aggr_w,
      jnp.transpose(w1), b1.reshape(1, H),
      jnp.transpose(w2), b2.reshape(1, H))
    mean = mean.reshape(B, H)

    # final Linear hoisted out of the per-batch kernel: lane-dense (B, H) mean,
    # batched GEMM + bias in plain XLA (avoids M=1/N=6 masked-store matmuls).
    return mean @ w3.T + b3


def dense_reference(x, lengths, params):
    """Pure-JAX reference matching the PyTorch forward."""
    aggr_w, w1, b1, w2, b2, w3, b3 = params
    B, L, S, F = x.shape
    agg = jnp.einsum('blsf,l->bsf', x, aggr_w)                      # aggr conv
    h1 = jax.nn.relu(jnp.einsum('bsf,hf->bsh', agg, w1) + b1)       # cnn
    h2 = jax.nn.relu(jnp.einsum('bsh,gh->bsg', h1, w2) + b2)        # cnn2
    outs = []
    for i in range(B):
        outs.append(jnp.mean(h2[i, :int(lengths[i]), :], axis=0))
    mean = jnp.stack(outs)
    return mean @ w3.T + b3


if __name__ == "__main__":
    # small shapes: batch=2, num_layers=4, seq=16, feature_dim=32, hidden=16, labels=6
    B, L, S, F, H, LBL = 2, 4, 16, 32, 16, 6

    key = jax.random.PRNGKey(0)
    kx, ka, k1, kb1, k2, kb2, k3, kb3 = jax.random.split(key, 8)

    x = jax.random.normal(kx, (B, L, S, F), dtype=jnp.float32)
    lengths = jnp.array([10, 16], dtype=jnp.int32)

    # deterministic synthetic parameters (PyTorch shapes: aggr (1,L,1), cnn (H,F,1)+(H,),
    # cnn2 (H,H,1)+(H,), linear (LBL,H)+(LBL,)) — squeezed kernel-size-1 axes.
    aggr_w = jax.random.normal(ka, (L,), dtype=jnp.float32) * 0.3
    w1 = jax.random.normal(k1, (H, F), dtype=jnp.float32) * 0.1
    b1 = jax.random.normal(kb1, (H,), dtype=jnp.float32) * 0.1
    w2 = jax.random.normal(k2, (H, H), dtype=jnp.float32) * 0.1
    b2 = jax.random.normal(kb2, (H,), dtype=jnp.float32) * 0.1
    w3 = jax.random.normal(k3, (LBL, H), dtype=jnp.float32) * 0.1
    b3 = jax.random.normal(kb3, (LBL,), dtype=jnp.float32) * 0.1
    params = (aggr_w, w1, b1, w2, b2, w3, b3)

    logits = dense_forward(x, lengths, params)
    logits = jax.block_until_ready(logits)

    ref = dense_reference(x, lengths, params)
    np.testing.assert_allclose(np.asarray(logits), np.asarray(ref), rtol=1e-5, atol=1e-5)

    print("KERNEL_OK")
</pallas_src>

<mosaic_0001>
module attributes {stable_mosaic.version = 11 : i64} {
  func.func @dense_kernel(%arg0: i32, %arg1: i32, %arg2: memref<2xi32, #tpu.memory_space<smem>>, %arg3: memref<1x4x8x32xf32, #tpu.memory_space<vmem>>, %arg4: memref<4xf32, #tpu.memory_space<smem>>, %arg5: memref<32x16xf32, #tpu.memory_space<vmem>>, %arg6: memref<1x16xf32, #tpu.memory_space<vmem>>, %arg7: memref<16x16xf32, #tpu.memory_space<vmem>>, %arg8: memref<1x16xf32, #tpu.memory_space<vmem>>, %arg9: memref<1x1x16xf32, #tpu.memory_space<vmem>>, %arg10: memref<1x16xf32, #tpu.memory_space<vmem>>) attributes {dimension_semantics = [#tpu.dimension_semantics<parallel>, #tpu.dimension_semantics<arbitrary>], iteration_bounds = array<i64: 2, 2>, scalar_prefetch = 1 : i64, scratch_operands = 1 : i64, tpu.core_type = #tpu.core_type<tc>, window_params = [{transform_indices = @transform_0, window_bounds = array<i64: 1, 4, 8, 32>}, {transform_indices = @transform_1, window_bounds = array<i64: 4>}, {pipeline_mode = #tpu.pipeline_mode<synchronous>, transform_indices = @transform_2, window_bounds = array<i64: 32, 16>}, {pipeline_mode = #tpu.pipeline_mode<synchronous>, transform_indices = @transform_3, window_bounds = array<i64: 1, 16>}, {pipeline_mode = #tpu.pipeline_mode<synchronous>, transform_indices = @transform_4, window_bounds = array<i64: 16, 16>}, {pipeline_mode = #tpu.pipeline_mode<synchronous>, transform_indices = @transform_5, window_bounds = array<i64: 1, 16>}, {transform_indices = @transform_6, window_bounds = array<i64: 1, 1, 16>}]} {
    %c0_i32 = arith.constant 0 : i32
    %0 = arith.cmpi eq, %arg1, %c0_i32 : i32
    %1 = arith.extui %0 : i1 to i32
    %c0_i32_0 = arith.constant 0 : i32
    %2 = arith.cmpi ne, %1, %c0_i32_0 : i32
    scf.if %2 {
      %cst_34 = arith.constant 0.000000e+00 : f32
      %57 = vector.broadcast %cst_34 : f32 to vector<1x16xf32>
      %c0_35 = arith.constant 0 : index
      %c0_36 = arith.constant 0 : index
      %58 = vector.load %arg10[%c0_35, %c0_36] : memref<1x16xf32, #tpu.memory_space<vmem>>, vector<1x16xf32>
      tpu.vector_store %arg10[%c0_35, %c0_36], %57 {strides = array<i32>} : memref<1x16xf32, #tpu.memory_space<vmem>>, vector<1x16xf32>,
    } else {
    }
    %c0 = arith.constant 0 : index
    %3 = memref.load %arg4[%c0] : memref<4xf32, #tpu.memory_space<smem>>
    %c0_1 = arith.constant 0 : index
    %c0_2 = arith.constant 0 : index
    %c0_3 = arith.constant 0 : index
    %c0_4 = arith.constant 0 : index
    %4 = vector.load %arg3[%c0_1, %c0_2, %c0_3, %c0_4] : memref<1x4x8x32xf32, #tpu.memory_space<vmem>>, vector<1x1x8x32xf32>
    %5 = vector.shape_cast %4 : vector<1x1x8x32xf32> to vector<8x32xf32>
    %6 = vector.broadcast %3 : f32 to vector<8x32xf32>
    %7 = arith.mulf %6, %5 : vector<8x32xf32>
    %c1 = arith.constant 1 : index
    %8 = memref.load %arg4[%c1] : memref<4xf32, #tpu.memory_space<smem>>
    %c0_5 = arith.constant 0 : index
    %c1_6 = arith.constant 1 : index
    %c0_7 = arith.constant 0 : index
    %c0_8 = arith.constant 0 : index
    %9 = vector.load %arg3[%c0_5, %c1_6, %c0_7, %c0_8] : memref<1x4x8x32xf32, #tpu.memory_space<vmem>>, vector<1x1x8x32xf32>
    %10 = vector.shape_cast %9 : vector<1x1x8x32xf32> to vector<8x32xf32>
    %11 = vector.broadcast %8 : f32 to vector<8x32xf32>
    %12 = arith.mulf %11, %10 : vector<8x32xf32>
    %13 = arith.addf %7, %12 : vector<8x32xf32>
    %c2 = arith.constant 2 : index
    %14 = memref.load %arg4[%c2] : memref<4xf32, #tpu.memory_space<smem>>
    %c0_9 = arith.constant 0 : index
    %c2_10 = arith.constant 2 : index
    %c0_11 = arith.constant 0 : index
    %c0_12 = arith.constant 0 : index
    %15 = vector.load %arg3[%c0_9, %c2_10, %c0_11, %c0_12] : memref<1x4x8x32xf32, #tpu.memory_space<vmem>>, vector<1x1x8x32xf32>
    %16 = vector.shape_cast %15 : vector<1x1x8x32xf32> to vector<8x32xf32>
    %17 = vector.broadcast %14 : f32 to vector<8x32xf32>
    %18 = arith.mulf %17, %16 : vector<8x32xf32>
    %19 = arith.addf %13, %18 : vector<8x32xf32>
    %c3 = arith.constant 3 : index
    %20 = memref.load %arg4[%c3] : memref<4xf32, #tpu.memory_space<smem>>
    %c0_13 = arith.constant 0 : index
    %c3_14 = arith.constant 3 : index
    %c0_15 = arith.constant 0 : index
    %c0_16 = arith.constant 0 : index
    %21 = vector.load %arg3[%c0_13, %c3_14, %c0_15, %c0_16] : memref<1x4x8x32xf32, #tpu.memory_space<vmem>>, vector<1x1x8x32xf32>
    %22 = vector.shape_cast %21 : vector<1x1x8x32xf32> to vector<8x32xf32>
    %23 = vector.broadcast %20 : f32 to vector<8x32xf32>
    %24 = arith.mulf %23, %22 : vector<8x32xf32>
    %25 = arith.addf %19, %24 : vector<8x32xf32>
    %c0_17 = arith.constant 0 : index
    %c0_18 = arith.constant 0 : index
    %26 = vector.load %arg5[%c0_17, %c0_18] : memref<32x16xf32, #tpu.memory_space<vmem>>, vector<32x16xf32>
    %cst = arith.constant dense<0.000000e+00> : vector<8x16xf32>
    %27 = tpu.matmul %25, %26, %cst {dimension_numbers = #tpu.dot_dimension_numbers<[1], [0], [0], [1], [0, 0, 1, 1], [], []>} : vector<8x32xf32>, vector<32x16xf32>, vector<8x16xf32> -> vector<8x16xf32>
    %c0_19 = arith.constant 0 : index
    %c0_20 = arith.constant 0 : index
    %28 = vector.load %arg6[%c0_19, %c0_20] : memref<1x16xf32, #tpu.memory_space<vmem>>, vector<1x16xf32>
    %29 = vector.broadcast %28 : vector<1x16xf32> to vector<8x16xf32>
    %30 = arith.addf %27, %29 : vector<8x16xf32>
    %cst_21 = arith.constant 0.000000e+00 : f32
    %31 = vector.broadcast %cst_21 : f32 to vector<8x16xf32>
    %32 = arith.maximumf %30, %31 : vector<8x16xf32>
    %c0_22 = arith.constant 0 : index
    %c0_23 = arith.constant 0 : index
    %33 = vector.load %arg7[%c0_22, %c0_23] : memref<16x16xf32, #tpu.memory_space<vmem>>, vector<16x16xf32>
    %cst_24 = arith.constant dense<0.000000e+00> : vector<8x16xf32>
    %34 = tpu.matmul %32, %33, %cst_24 {dimension_numbers = #tpu.dot_dimension_numbers<[1], [0], [0], [1], [0, 0, 1, 1], [], []>} : vector<8x16xf32>, vector<16x16xf32>, vector<8x16xf32> -> vector<8x16xf32>
    %c0_25 = arith.constant 0 : index
    %c0_26 = arith.constant 0 : index
    %35 = vector.load %arg8[%c0_25, %c0_26] : memref<1x16xf32, #tpu.memory_space<vmem>>, vector<1x16xf32>
    %36 = vector.broadcast %35 : vector<1x16xf32> to vector<8x16xf32>
    %37 = arith.addf %34, %36 : vector<8x16xf32>
    %cst_27 = arith.constant 0.000000e+00 : f32
    %38 = vector.broadcast %cst_27 : f32 to vector<8x16xf32>
    %39 = arith.maximumf %37, %38 : vector<8x16xf32>
    %40 = arith.index_cast %arg0 : i32 to index
    %41 = memref.load %arg2[%40] : memref<2xi32, #tpu.memory_space<smem>>
    %c8_i32 = arith.constant 8 : i32
    %42 = arith.muli %arg1, %c8_i32 : i32
    %43 = tpu.iota {dimensions = array<i32: 1>} : vector<1x8xi32>
    %44 = vector.broadcast %42 : i32 to vector<1x8xi32>
    %45 = arith.addi %44, %43 : vector<1x8xi32>
    %46 = vector.broadcast %41 : i32 to vector<1x8xi32>
    %47 = arith.cmpi slt, %45, %46 : vector<1x8xi32>
    %48 = arith.extui %47 : vector<1x8xi1> to vector<1x8xi32>
    %49 = arith.sitofp %48 : vector<1x8xi32> to vector<1x8xf32>
    %c0_28 = arith.constant 0 : index
    %c0_29 = arith.constant 0 : index
    %50 = vector.load %arg10[%c0_28, %c0_29] : memref<1x16xf32, #tpu.memory_space<vmem>>, vector<1x16xf32>
    %cst_30 = arith.constant dense<0.000000e+00> : vector<1x16xf32>
    %51 = tpu.matmul %49, %39, %cst_30 {dimension_numbers = #tpu.dot_dimension_numbers<[1], [0], [0], [1], [0, 0, 1, 1], [], []>} : vector<1x8xf32>, vector<8x16xf32>, vector<1x16xf32> -> vector<1x16xf32>
    %52 = arith.addf %50, %51 : vector<1x16xf32>
    %c0_31 = arith.constant 0 : index
    %c0_32 = arith.constant 0 : index
    %53 = vector.load %arg10[%c0_31, %c0_32] : memref<1x16xf32, #tpu.memory_space<vmem>>, vector<1x16xf32>
    tpu.vector_store %arg10[%c0_31, %c0_32], %52 {strides = array<i32>} : memref<1x16xf32, #tpu.memory_space<vmem>>, vector<1x16xf32>,
    %c1_i32 = arith.constant 1 : i32
    %54 = arith.cmpi eq, %arg1, %c1_i32 : i32
    %55 = arith.extui %54 : i1 to i32
    %c0_i32_33 = arith.constant 0 : i32
    %56 = arith.cmpi ne, %55, %c0_i32_33 : i32
    scf.if %56 {
      %c1_i32_34 = arith.constant 1 : i32
      %57 = arith.maxsi %41, %c1_i32_34 : i32
      %58 = arith.sitofp %57 : i32 to f32
      %c0_35 = arith.constant 0 : index
      %c0_36 = arith.constant 0 : index
      %59 = vector.load %arg10[%c0_35, %c0_36] : memref<1x16xf32, #tpu.memory_space<vmem>>, vector<1x16xf32>
      %60 = vector.broadcast %58 : f32 to vector<1x16xf32>
      %61 = arith.divf %59, %60 : vector<1x16xf32>
      %c0_37 = arith.constant 0 : index
      %c0_38 = arith.constant 0 : index
      %c0_39 = arith.constant 0 : index
      %62 = vector.load %arg9[%c0_37, %c0_38, %c0_39] : memref<1x1x16xf32, #tpu.memory_space<vmem>>, vector<1x1x16xf32>
      %63 = vector.shape_cast %62 : vector<1x1x16xf32> to vector<1x16xf32>
      %64 = vector.shape_cast %61 : vector<1x16xf32> to vector<1x1x16xf32>
      tpu.vector_store %arg9[%c0_37, %c0_38, %c0_39], %64 {strides = array<i32>} : memref<1x1x16xf32, #tpu.memory_space<vmem>>, vector<1x1x16xf32>,
    } else {
    }
    return
  }
  func.func @transform_0(%arg0: i32, %arg1: i32, %arg2: memref<2xi32, #tpu.memory_space<smem>>) -> (i32, i32, i32, i32) {
    %c0_i32 = arith.constant 0 : i32
    %c0_i32_0 = arith.constant 0 : i32
    %c0_i32_1 = arith.constant 0 : i32
    return %arg0, %c0_i32, %arg1, %c0_i32_0 : i32, i32, i32, i32
  }
  func.func @transform_1(%arg0: i32, %arg1: i32, %arg2: memref<2xi32, #tpu.memory_space<smem>>) -> i32 {
    %c0_i32 = arith.constant 0 : i32
    %c0_i32_0 = arith.constant 0 : i32
    return %c0_i32 : i32
  }
  func.func @transform_2(%arg0: i32, %arg1: i32, %arg2: memref<2xi32, #tpu.memory_space<smem>>) -> (i32, i32) {
    %c0_i32 = arith.constant 0 : i32
    %c0_i32_0 = arith.constant 0 : i32
    %c0_i32_1 = arith.constant 0 : i32
    return %c0_i32, %c0_i32_0 : i32, i32
  }
  func.func @transform_3(%arg0: i32, %arg1: i32, %arg2: memref<2xi32, #tpu.memory_space<smem>>) -> (i32, i32) {
    %c0_i32 = arith.constant 0 : i32
    %c0_i32_0 = arith.constant 0 : i32
    %c0_i32_1 = arith.constant 0 : i32
    return %c0_i32, %c0_i32_0 : i32, i32
  }
  func.func @transform_4(%arg0: i32, %arg1: i32, %arg2: memref<2xi32, #tpu.memory_space<smem>>) -> (i32, i32) {
    %c0_i32 = arith.constant 0 : i32
    %c0_i32_0 = arith.constant 0 : i32
    %c0_i32_1 = arith.constant 0 : i32
    return %c0_i32, %c0_i32_0 : i32, i32
  }
  func.func @transform_5(%arg0: i32, %arg1: i32, %arg2: memref<2xi32, #tpu.memory_space<smem>>) -> (i32, i32) {
    %c0_i32 = arith.constant 0 : i32
    %c0_i32_0 = arith.constant 0 : i32
    %c0_i32_1 = arith.constant 0 : i32
    return %c0_i32, %c0_i32_0 : i32, i32
  }
  func.func @transform_6(%arg0: i32, %arg1: i32, %arg2: memref<2xi32, #tpu.memory_space<smem>>) -> (i32, i32, i32) {
    %c0_i32 = arith.constant 0 : i32
    %c0_i32_0 = arith.constant 0 : i32
    %c0_i32_1 = arith.constant 0 : i32
    return %arg0, %c0_i32, %c0_i32_0 : i32, i32, i32
  }
}

</mosaic_0001>

<llo_original>
// kernel: tpu_custom_call.1
$region0: #{tpu_custom_call.1}
  #allocation0 [shape = 'u32[]', space=smem, size = 0x4, offset = 0x4, fixed_abs, tag = 'smem constant byte address 0x4 - core index']
  #allocation1 [shape = 'u32[144,128]{1,0:T(1,128)}', space=vmem, size = 0x12000, scoped, tag = 'internal scratch']
  #allocation2 [shape = 'f32[1,16]{1,0:T(1,128)}', space=vmem, size = 0x200, scoped, tag = 'scratch operand']
  #allocation3 [shape = 's32[1]{0}', space=sflag, size = 0x4, scoped, tag = 'scoped memory for tpu_custom_call.1']
  #allocation4 [shape = 'u8[512]{0}', space=smem, size = 0x200, scoped, tag = 'prefetched SMEM operand 0']
  %s0 = inlined_call_operand.vmem [shape: s32[2], index: 0, kind: input, shape index: {}]
  %s1 = inlined_call_operand.hbm [shape: f32[2,4,16,32], index: 1, kind: input, shape index: {}]
  %s2 = inlined_call_operand.vmem [shape: f32[4], index: 2, kind: input, shape index: {}]
  %s3 = inlined_call_operand.vmem [shape: f32[32,16], index: 3, kind: input, shape index: {}]
  %s4 = inlined_call_operand.vmem [shape: f32[1,16], index: 4, kind: input, shape index: {}]
  %s5 = inlined_call_operand.vmem [shape: f32[16,16], index: 5, kind: input, shape index: {}]
  %s6 = inlined_call_operand.vmem [shape: f32[1,16], index: 6, kind: input, shape index: {}]
  %s7 = inlined_call_operand.hbm [shape: f32[2,1,16], index: 7, kind: output, shape index: {}]
  %s8 = sld [smem:[#allocation0]]
  $region73: #{tpu_custom_call.1} parent=0
    _
  %s10 = ssub.s32 1, %s8
  %s11 = scalar_select 0, %s10, %s8
  %s12 = sshll.u32 %s0, 4
  %s13 = int_to_ptr.vmem [resolvable:$true] %s12
  %15 = dma.vmem_to_smem %s13, 16, [#allocation4], [#allocation3]
  %16 = dma.done [#allocation3], 16
  %17 = sfence
  $region1: #{tpu_custom_call.1} parent=0
    #allocation5 [shape = 'u8[32768]{0}', space=vmem, size = 0x8000, scoped, tag = 'input window, operand 1']
    #allocation6 [shape = 's32[2]{0}', space=sflag, size = 0x8, scoped, tag = 'scoped memory for tpu_custom_call.1']
    #allocation7 [shape = 's32[2]{0}', space=sflag, size = 0x8, scoped, tag = 'scoped memory for tpu_custom_call.1']
    #allocation8 [shape = 's32[2]{0}', space=sflag, size = 0x8, scoped, tag = 'scoped memory for tpu_custom_call.1']
    #allocation9 [shape = 'u8[512]{0}', space=smem, size = 0x200, scoped, tag = 'input window, operand 2, single buffered']
    #allocation10 [shape = 'u8[1024]{0}', space=vmem, size = 0x400, scoped, tag = 'output window, operand 0']
    %18 = vsyncpa [#allocation6], 0
    %s19 = scalar_lea.sflag [#allocation6], 1
    %20 = vsyncpa %s19, 0
    %21 = vsyncpa [#allocation8], 0
    %22 = vsyncpa [#allocation7], 0
    %s23 = scalar_lea.sflag [#allocation7], 1
    %24 = vsyncpa %s23, 0
    loop: start=0, step=1, limit=6
    $region2: #{tpu_custom_call.1} parent=1 // loop_pre_header
      _
    $region3: #{tpu_custom_call.1} parent=1 // loop_header
      %s26 = sphi 0, %s30
      %p27 = scmp.ge.s32.totalorder %s26, 6
      %s33 = sphi 0, %s45
      %s34 = sphi 0, %s41
      %s35 = sphi 0, %s33
      %s36 = sphi 0, %s34
      %s37 = sphi 0, %s35
      %s38 = sphi 0, %s36
      %s50 = sphi 0, %s52
      %s53 = sphi 0, %s50
      %s54 = sphi 0, %s53
      %s70 = sphi 0, %s54
      %s74 = sphi 0, %s74
      %s76 = sphi 0, %s74
      %s77 = sphi 0, %s76
      %s91 = sphi 0, %s77
      %s95 = sphi 0, %s95
      %s97 = sphi 0, %s95
      %s98 = sphi 0, %s97
      %s112 = sphi 0, %s98
      %s116 = sphi 0, %s116
      %s118 = sphi 0, %s116
      %s119 = sphi 0, %s118
      %s133 = sphi 0, %s119
      %s137 = sphi 0, %s137
      %s139 = sphi 0, %s137
      %s140 = sphi 0, %s139
      %s154 = sphi 0, %s140
      %s158 = sphi 0, %s158
      %s160 = sphi 0, %s158
      %s161 = sphi 0, %s160
      %s175 = sphi 0, %s161
      %s181 = sphi 0, %s183
      %s184 = sphi 0, %s181
      %s185 = sphi 0, %s184
      %s201 = sphi 0, %s185
    $region4: #{tpu_custom_call.1} parent=1 // loop_header_branch
      %29 = sbr.rel (%p27) target = $region8
    $region5: #{tpu_custom_call.1} parent=1 // loop_body
      %s31 = ssub.s32 %s26, 1
      %s32 = ssub.s32 %s26, 2
      %s39 = sadd.s32 1, %s34
      %p40 = scmp.ge.s32.totalorder %s39, 2
      %s41 = scalar_select %p40, 0, %s39
      %s42 = sadd.s32 1, %s33
      %s43 = scalar_select %p40, %s42, %s33
      %p44 = scmp.ge.s32.totalorder %s43, 2
      %s45 = scalar_select %p44, 0, %s43
      %s46 = ssub.s32 %s33, %s45
      %s47 = ssub.s32 %s34, %s41
      %s48 = sor.u32 %s46, %s47
      %p49 = scmp.eq.s32.totalorder %s48, 0
      %s51 = sadd.s32 %s50, 1
      %s52 = scalar_select %p49, %s50, %s51
      %p55 = pneg %p49
      %p56 = scmp.eq.s32.totalorder %s26, 3
      %p57 = por %p55, %p56
      %p58 = scmp.ne.s32.totalorder %s50, %s53
      %p59 = scmp.eq.s32.totalorder %s26, 0
      %p60 = por %p58, %p59
      %p61 = scmp.ne.s32.totalorder %s50, %s53
      %p62 = scmp.eq.s32.totalorder %s31, 3
      %p63 = por %p61, %p62
      %p64 = scmp.ne.s32.totalorder %s53, %s54
      %p65 = scmp.eq.s32.totalorder %s31, 0
      %p66 = por %p64, %p65
      %p67 = scmp.ne.s32.totalorder %s53, %s54
      %p68 = scmp.eq.s32.totalorder %s32, 3
      %p69 = por %p67, %p68
      %p71 = scmp.ne.s32.totalorder %s54, %s70
      %p72 = scmp.eq.s32.totalorder %s32, 0
      %p73 = por %p71, %p72
      %s75 = sadd.s32 %s74, 1
      %p78 = scmp.eq.s32.totalorder %s26, 3
      %p79 = scmp.ne.s32.totalorder %s74, %s76
      %p80 = scmp.eq.s32.totalorder %s26, 0
      %p81 = por %p79, %p80
      %p82 = scmp.ne.s32.totalorder %s74, %s76
      %p83 = scmp.eq.s32.totalorder %s31, 3
      %p84 = por %p82, %p83
      %p85 = scmp.ne.s32.totalorder %s76, %s77
      %p86 = scmp.eq.s32.totalorder %s31, 0
      %p87 = por %p85, %p86
      %p88 = scmp.ne.s32.totalorder %s76, %s77
      %p89 = scmp.eq.s32.totalorder %s32, 3
      %p90 = por %p88, %p89
      %p92 = scmp.ne.s32.totalorder %s77, %s91
      %p93 = scmp.eq.s32.totalorder %s32, 0
      %p94 = por %p92, %p93
      %s96 = sadd.s32 %s95, 1
      %p99 = scmp.eq.s32.totalorder %s26, 3
      %p100 = scmp.ne.s32.totalorder %s95, %s97
      %p101 = scmp.eq.s32.totalorder %s26, 0
      %p102 = por %p100, %p101
      %p103 = scmp.ne.s32.totalorder %s95, %s97
      %p104 = scmp.eq.s32.totalorder %s31, 3
      %p105 = por %p103, %p104
      %p106 = scmp.ne.s32.totalorder %s97, %s98
      %p107 = scmp.eq.s32.totalorder %s31, 0
      %p108 = por %p106, %p107
      %p109 = scmp.ne.s32.totalorder %s97, %s98
      %p110 = scmp.eq.s32.totalorder %s32, 3
      %p111 = por %p109, %p110
      %p113 = scmp.ne.s32.totalorder %s98, %s112
      %p114 = scmp.eq.s32.totalorder %s32, 0
      %p115 = por %p113, %p114
      %s117 = sadd.s32 %s116, 1
      %p120 = scmp.eq.s32.totalorder %s26, 3
      %p121 = scmp.ne.s32.totalorder %s116, %s118
      %p122 = scmp.eq.s32.totalorder %s26, 0
      %p123 = por %p121, %p122
      %p124 = scmp.ne.s32.totalorder %s116, %s118
      %p125 = scmp.eq.s32.totalorder %s31, 3
      %p126 = por %p124, %p125
      %p127 = scmp.ne.s32.totalorder %s118, %s119
      %p128 = scmp.eq.s32.totalorder %s31, 0
      %p129 = por %p127, %p128
      %p130 = scmp.ne.s32.totalorder %s118, %s119
      %p131 = scmp.eq.s32.totalorder %s32, 3
      %p132 = por %p130, %p131
      %p134 = scmp.ne.s32.totalorder %s119, %s133
      %p135 = scmp.eq.s32.totalorder %s32, 0
      %p136 = por %p134, %p135
      %s138 = sadd.s32 %s137, 1
      %p141 = scmp.eq.s32.totalorder %s26, 3
      %p142 = scmp.ne.s32.totalorder %s137, %s139
      %p143 = scmp.eq.s32.totalorder %s26, 0
      %p144 = por %p142, %p143
      %p145 = scmp.ne.s32.totalorder %s137, %s139
      %p146 = scmp.eq.s32.totalorder %s31, 3
      %p147 = por %p145, %p146
      %p148 = scmp.ne.s32.totalorder %s139, %s140
      %p149 = scmp.eq.s32.totalorder %s31, 0
      %p150 = por %p148, %p149
      %p151 = scmp.ne.s32.totalorder %s139, %s140
      %p152 = scmp.eq.s32.totalorder %s32, 3
      %p153 = por %p151, %p152
      %p155 = scmp.ne.s32.totalorder %s140, %s154
      %p156 = scmp.eq.s32.totalorder %s32, 0
      %p157 = por %p155, %p156
      %s159 = sadd.s32 %s158, 1
      %p162 = scmp.eq.s32.totalorder %s26, 3
      %p163 = scmp.ne.s32.totalorder %s158, %s160
      %p164 = scmp.eq.s32.totalorder %s26, 0
      %p165 = por %p163, %p164
      %p166 = scmp.ne.s32.totalorder %s158, %s160
      %p167 = scmp.eq.s32.totalorder %s31, 3
      %p168 = por %p166, %p167
      %p169 = scmp.ne.s32.totalorder %s160, %s161
      %p170 = scmp.eq.s32.totalorder %s31, 0
      %p171 = por %p169, %p170
      %p172 = scmp.ne.s32.totalorder %s160, %s161
      %p173 = scmp.eq.s32.totalorder %s32, 3
      %p174 = por %p172, %p173
      %p176 = scmp.ne.s32.totalorder %s161, %s175
      %p177 = scmp.eq.s32.totalorder %s32, 0
      %p178 = por %p176, %p177
      %s179 = ssub.s32 %s33, %s45
      %p180 = scmp.eq.s32.totalorder %s179, 0
      %s182 = sadd.s32 %s181, 1
      %s183 = scalar_select %p180, %s181, %s182
      %p186 = pneg %p180
      %p187 = scmp.eq.s32.totalorder %s26, 3
      %p188 = por %p186, %p187
      %p189 = scmp.ne.s32.totalorder %s181, %s184
      %p190 = scmp.eq.s32.totalorder %s26, 0
      %p191 = por %p189, %p190
      %p192 = scmp.ne.s32.totalorder %s181, %s184
      %p193 = scmp.eq.s32.totalorder %s31, 3
      %p194 = por %p192, %p193
      %p195 = scmp.ne.s32.totalorder %s184, %s185
      %p196 = scmp.eq.s32.totalorder %s31, 0
      %p197 = por %p195, %p196
      %p198 = scmp.ne.s32.totalorder %s184, %s185
      %p199 = scmp.eq.s32.totalorder %s32, 3
      %p200 = por %p198, %p199
      %p202 = scmp.ne.s32.totalorder %s185, %s201
      %p203 = scmp.eq.s32.totalorder %s32, 0
      %p204 = por %p202, %p203
      %p205 = scmp.le.s32.totalorder 1, %s26
      %p206 = scmp.lt.s32.totalorder %s26, 5
      %p207 = pnand %p205, %p206
      %p208 = pneg %p207
      // Predicated region
      $region9: #{tpu_custom_call.1} parent=5 // pred_check
        _
      $region10: #{tpu_custom_call.1} parent=5 // pred_check_branch
        %210 = sbr.rel (%p207) target = $region12
      $region11: #{tpu_custom_call.1} parent=5 // pred_region
        %s211 = ssub.s32 %s26, 1
        // Predicated region
        $region13: #{tpu_custom_call.1} parent=11 // pred_check
          %p212 = pneg %p87
        $region14: #{tpu_custom_call.1} parent=11 // pred_check_branch
          %214 = sbr.rel (%p212) target = $region16
        $region15: #{tpu_custom_call.1} parent=11 // pred_region
          %s216 = ssub.s32 16, 16
          %217 = vsyncadd [#allocation8], %s216
          %s219 = sshll.u32 %s2, 4
          %s220 = int_to_ptr.vmem [resolvable:$true] %s219
          %222 = dma.vmem_to_smem %s220, 16, [#allocation9], [#allocation8]
        $region16: #{tpu_custom_call.1} parent=11 // pred_fallthru
          _
        // Predicated region
        $region17: #{tpu_custom_call.1} parent=11 // pred_check
          %p223 = pneg %p108
        $region18: #{tpu_custom_call.1} parent=11 // pred_check_branch
          %225 = sbr.rel (%p223) target = $region20
        $region19: #{tpu_custom_call.1} parent=11 // pred_region
          _
        $region20: #{tpu_custom_call.1} parent=11 // pred_fallthru
          _
        // Predicated region
        $region21: #{tpu_custom_call.1} parent=11 // pred_check
          %p226 = pneg %p129
        $region22: #{tpu_custom_call.1} parent=11 // pred_check_branch
          %228 = sbr.rel (%p226) target = $region24
        $region23: #{tpu_custom_call.1} parent=11 // pred_region
          _
        $region24: #{tpu_custom_call.1} parent=11 // pred_fallthru
          _
        // Predicated region
        $region25: #{tpu_custom_call.1} parent=11 // pred_check
          %p229 = pneg %p150
        $region26: #{tpu_custom_call.1} parent=11 // pred_check_branch
          %231 = sbr.rel (%p229) target = $region28
        $region27: #{tpu_custom_call.1} parent=11 // pred_region
          _
        $region28: #{tpu_custom_call.1} parent=11 // pred_fallthru
          _
        // Predicated region
        $region29: #{tpu_custom_call.1} parent=11 // pred_check
          %p232 = pneg %p171
        $region30: #{tpu_custom_call.1} parent=11 // pred_check_branch
          %234 = sbr.rel (%p232) target = $region32
        $region31: #{tpu_custom_call.1} parent=11 // pred_region
          _
        $region32: #{tpu_custom_call.1} parent=11 // pred_fallthru
          _
      $region12: #{tpu_custom_call.1} parent=5 // pred_fallthru
        _
      %p235 = scmp.lt.s32.totalorder %s26, 4
      // Predicated region
      $region33: #{tpu_custom_call.1} parent=5 // pred_check
        %p236 = pneg %p235
      $region34: #{tpu_custom_call.1} parent=5 // pred_check_branch
        %238 = sbr.rel (%p236) target = $region36
      $region35: #{tpu_custom_call.1} parent=5 // pred_region
        // Predicated region
        $region37: #{tpu_custom_call.1} parent=35 // pred_check
          %p239 = pneg %p60
        $region38: #{tpu_custom_call.1} parent=35 // pred_check_branch
          %241 = sbr.rel (%p239) target = $region40
        $region39: #{tpu_custom_call.1} parent=35 // pred_region
          %s242 = sand.u32 %s50, 1
          %s243 = scalar_lea.sflag [#allocation6], %s242
          %s244 = sand.u32 %s50, 1
          %s245 = smul.addr %s244, 32
          %s246 = scalar_lea.vmem [#allocation5], %s245
          %s248 = ssub.s32 512, 512
          %249 = vsyncadd %s243, %s248
          %s250 = smul.addr %s33, 8
          %s251 = sadd.s32 %s34, %s250
          %s252 = smul.addr %s251, 128
          %s253 = scalar_lea.hbm %s1, %s252
          %s254 = sshll.u32 %s246, 4
          %s255 = int_to_ptr.vmem [resolvable:$true] %s254
          %260 = dma.hbm_to_vmem [thread:$0]  %s253, 512, %s255, %s243, 256, 128, 8
        $region40: #{tpu_custom_call.1} parent=35 // pred_fallthru
          _
      $region36: #{tpu_custom_call.1} parent=5 // pred_fallthru
        _
      %p261 = scmp.le.s32.totalorder 1, %s26
      %p262 = scmp.lt.s32.totalorder %s26, 5
      %p263 = pnand %p261, %p262
      %p264 = pneg %p263
      // Predicated region
      $region41: #{tpu_custom_call.1} parent=5 // pred_check
        _
      $region42: #{tpu_custom_call.1} parent=5 // pred_check_branch
        %266 = sbr.rel (%p263) target = $region44
      $region43: #{tpu_custom_call.1} parent=5 // pred_region
        %s267 = ssub.s32 %s26, 1
        %s268 = sand.u32 %s53, 1
        %s269 = scalar_lea.sflag [#allocation6], %s268
        %s270 = sand.u32 %s53, 1
        %s271 = smul.addr %s270, 32
        %s272 = scalar_lea.vmem [#allocation5], %s271
        // Predicated region
        $region45: #{tpu_custom_call.1} parent=43 // pred_check
          %p273 = pneg %p66
        $region46: #{tpu_custom_call.1} parent=43 // pred_check_branch
          %275 = sbr.rel (%p273) target = $region48
        $region47: #{tpu_custom_call.1} parent=43 // pred_region
          %276 = dma.done %s269, 512
        $region48: #{tpu_custom_call.1} parent=43 // pred_fallthru
          _
        // Predicated region
        $region49: #{tpu_custom_call.1} parent=43 // pred_check
          %p277 = pneg %p87
        $region50: #{tpu_custom_call.1} parent=43 // pred_check_branch
          %279 = sbr.rel (%p277) target = $region52
        $region51: #{tpu_custom_call.1} parent=43 // pred_region
          %280 = dma.done [#allocation8], 16
        $region52: #{tpu_custom_call.1} parent=43 // pred_fallthru
          _
        %281 = sfence
        %s282 = sand.u32 %s53, 1
        %s283 = scalar_lea.sflag [#allocation6], %s282
        %s284 = sand.u32 %s53, 1
        %s285 = smul.addr %s284, 32
        %s286 = scalar_lea.vmem [#allocation5], %s285
        %p287 = pneg %p66
        %p288 = pneg %p63
        %p289 = pneg %p87
        %p290 = pneg %p84
        %p291 = pneg %p108
        %p292 = pneg %p105
        %p293 = pneg %p129
        %p294 = pneg %p126
        %p295 = pneg %p150
        %p296 = pneg %p147
        %p297 = pneg %p171
        %p298 = pneg %p168
        %p299 = pneg %p197
        %p300 = pneg %p194
        %s301 = sand.u32 %s184, 1
        %s302 = scalar_lea.sflag [#allocation7], %s301
        %s303 = sand.u32 %s184, 1
        %s304 = scalar_lea.vmem [#allocation10], %s303
        %p305 = scmp.eq.s32.totalorder %s36, 0
        // Predicated region
        $region53: #{tpu_custom_call.1} parent=43 // pred_check
          %p306 = pneg %p305
        $region54: #{tpu_custom_call.1} parent=43 // pred_check_branch
          %308 = sbr.rel (%p306) target = $region56
        $region55: #{tpu_custom_call.1} parent=43 // pred_region
          %vm309 = vcmask 122880
          %310 = vst.msk [vmem:[#allocation2] sm:$0x1] %vm309, 0.0
        $region56: #{tpu_custom_call.1} parent=43 // pred_fallthru
          _
        %s311 = sld [smem:[#allocation9]]
        %v312 = vld [vmem:[%s272] sm:$0xff]
        %v313 = vstv %s311
        %v314 = vmul.f32 %v313, %v312
        %s315 = sld [smem:[#allocation9 + $0x1]]
        %s316 = scalar_lea.vmem %s272, 8 [#allocation5]
        %v317 = vld [vmem:[%s316] sm:$0xff]
        %v318 = vstv %s315
        %v319 = vmul.f32 %v318, %v317
        %v320 = vadd.f32 %v314, %v319
        %s321 = sld [smem:[#allocation9 + $0x2]]
        %s322 = scalar_lea.vmem %s272, 16 [#allocation5]
        %v323 = vld [vmem:[%s322] sm:$0xff]
        %v324 = vstv %s321
        %v325 = vmul.f32 %v324, %v323
        %v326 = vadd.f32 %v320, %v325
        %s327 = sld [smem:[#allocation9 + $0x3]]
        %s328 = scalar_lea.vmem %s272, 24 [#allocation5]
        %v329 = vld [vmem:[%s328] sm:$0xff]
        %v330 = vstv %s327
        %v331 = vmul.f32 %v330, %v329
        %v332 = vadd.f32 %v326, %v331
        %v333 = vld [vmem:[%s3] sm:$0xff]
        %v334 = vld [vmem:[%s3 + $0x8] sm:$0xff]
        %v335 = vld [vmem:[%s3 + $0x10] sm:$0xff]
        %v336 = vld [vmem:[%s3 + $0x18] sm:$0xff]
        %v337 = vld [vmem:[%s4] sm:$0x1]
        %v339 = vlaneseq
        %v340 = vshrl.u32 %v339, 7
        %v341 = vsub.s32 0, %v340
        %v342 = vrot.slane %v337, %v341
        %vm344 = vcmask 261120
        %v346 = vsel %vm344, %v332, 0
        %348 = vmatprep.subr.mxu0 0.0
        %349 = vmatpush1.msra.mxu0 %v333
        %350 = vmatprep.subr.mxu0 0.0
        %351 = vmatpush1.msra.mxu0 %v334
        %352 = vmatprep.subr.mxu0 0.0
        %353 = vmatpush1.msra.mxu0 %v335
        %354 = vmatprep.subr.mxu0 0.0
        %355 = vmatpush1.msra.mxu0 %v336
        %356 = vmatprep.subr.mxu0 0.0
        %357 = vmatpush1.msra.mxu0 0.0
        %358 = vmatprep.subr.mxu0 0.0
        %359 = vmatpush1.msra.mxu0 0.0
        %360 = vmatprep.subr.mxu0 0.0
        %361 = vmatpush1.msra.mxu0 0.0
        %362 = vmatprep.subr.mxu0 0.0
        %363 = vmatpush1.msra.mxu0 0.0
        %364 = vmatprep.subr.mxu0 0.0
        %365 = vmatpush1.msra.mxu0 0.0
        %366 = vmatprep.subr.mxu0 0.0
        %367 = vmatpush1.msra.mxu0 0.0
        %368 = vmatprep.subr.mxu0 0.0
        %369 = vmatpush1.msra.mxu0 0.0
        %370 = vmatprep.subr.mxu0 0.0
        %371 = vmatpush1.msra.mxu0 0.0
        %372 = vmatprep.subr.mxu0 0.0
        %373 = vmatpush1.msra.mxu0 0.0
        %374 = vmatprep.subr.mxu0 0.0
        %375 = vmatpush1.msra.mxu0 0.0
        %376 = vmatprep.subr.mxu0 0.0
        %377 = vmatpush1.msra.mxu0 0.0
        %378 = vmatprep.subr.mxu0 0.0
        %379 = vmatpush1.msra.mxu0 0.0
        %380 = vmatprep.subr.mxu0 0.0
        %381 = vmatpush1.msra.mxu0 0.0
        %382 = vmatprep.subr.mxu0 0.0
        %383 = vmatpush1.msra.mxu0 0.0
        %384 = vmatprep.subr.mxu0 0.0
        %385 = vmatpush1.msra.mxu0 0.0
        %386 = vmatprep.subr.mxu0 0.0
        %387 = vmatpush1.msra.mxu0 0.0
        %388 = vmatprep.subr.mxu0 0.0
        %389 = vmatpush1.msra.mxu0 0.0
        %390 = vmatprep.subr.mxu0 0.0
        %391 = vmatpush1.msra.mxu0 0.0
        %392 = vmatprep.subr.mxu0 0.0
        %393 = vmatpush1.msra.mxu0 0.0
        %394 = vmatprep.subr.mxu0 0.0
        %395 = vmatpush1.msra.mxu0 0.0
        %396 = vmatprep.subr.mxu0 0.0
        %397 = vmatpush1.msra.mxu0 0.0
        %398 = vmatprep.subr.mxu0 0.0
        %399 = vmatpush1.msra.mxu0 0.0
        %400 = vmatprep.subr.mxu0 0.0
        %401 = vmatpush1.msra.mxu0 0.0
        %402 = vmatprep.subr.mxu0 0.0
        %403 = vmatpush1.msra.mxu0 0.0
        %404 = vmatprep.subr.mxu0 0.0
        %405 = vmatpush1.msra.mxu0 0.0
        %406 = vmatprep.subr.mxu0 0.0
        %407 = vmatpush1.msra.mxu0 0.0
        %408 = vmatprep.subr.mxu0 0.0
        %409 = vmatpush1.msra.mxu0 0.0
        %410 = vmatprep.subr.mxu0 0.0
        %411 = vmatpush1.msra.mxu0 0.0
        %412 = vmatprep.mubr.f32.mxu0 0.0
        %413 = vmatmul.mubr.f32.gmra.mrb[0].mxu0 %v346
        %v414 = vpop.f32.mrb[0].mxu0
        %v415 = vadd.f32 %v342, %v414
        %v416 = vpop.f32.mrb[0].mxu0
        %417 = vdwg.mxu0
        %v418 = vmax.f32 %v415, 0.0
        %v419 = vld [vmem:[%s5] sm:$0xff]
        %v420 = vld [vmem:[%s5 + $0x8] sm:$0xff]
        %v421 = vld [vmem:[%s6] sm:$0x1]
        %v423 = vlaneseq
        %v424 = vshrl.u32 %v423, 7
        %v425 = vsub.s32 0, %v424
        %v426 = vrot.slane %v421, %v425
        %vm428 = vcmask 130048
        %v430 = vsel %vm428, %v418, 0
        %432 = vmatprep.subr.mxu0 0.0
        %433 = vmatpush1.msra.mxu0 %v419
        %434 = vmatprep.subr.mxu0 0.0
        %435 = vmatpush1.msra.mxu0 %v420
        %436 = vmatprep.subr.mxu0 0.0
        %437 = vmatpush1.msra.mxu0 0.0
        %438 = vmatprep.subr.mxu0 0.0
        %439 = vmatpush1.msra.mxu0 0.0
        %440 = vmatprep.subr.mxu0 0.0
        %441 = vmatpush1.msra.mxu0 0.0
        %442 = vmatprep.subr.mxu0 0.0
        %443 = vmatpush1.msra.mxu0 0.0
        %444 = vmatprep.subr.mxu0 0.0
        %445 = vmatpush1.msra.mxu0 0.0
        %446 = vmatprep.subr.mxu0 0.0
        %447 = vmatpush1.msra.mxu0 0.0
        %448 = vmatprep.subr.mxu0 0.0
        %449 = vmatpush1.msra.mxu0 0.0
        %450 = vmatprep.subr.mxu0 0.0
        %451 = vmatpush1.msra.mxu0 0.0
        %452 = vmatprep.subr.mxu0 0.0
        %453 = vmatpush1.msra.mxu0 0.0
        %454 = vmatprep.subr.mxu0 0.0
        %455 = vmatpush1.msra.mxu0 0.0
        %456 = vmatprep.subr.mxu0 0.0
        %457 = vmatpush1.msra.mxu0 0.0
        %458 = vmatprep.subr.mxu0 0.0
        %459 = vmatpush1.msra.mxu0 0.0
        %460 = vmatprep.subr.mxu0 0.0
        %461 = vmatpush1.msra.mxu0 0.0
        %462 = vmatprep.subr.mxu0 0.0
        %463 = vmatpush1.msra.mxu0 0.0
        %464 = vmatprep.subr.mxu0 0.0
        %465 = vmatpush1.msra.mxu0 0.0
        %466 = vmatprep.subr.mxu0 0.0
        %467 = vmatpush1.msra.mxu0 0.0
        %468 = vmatprep.subr.mxu0 0.0
        %469 = vmatpush1.msra.mxu0 0.0
        %470 = vmatprep.subr.mxu0 0.0
        %471 = vmatpush1.msra.mxu0 0.0
        %472 = vmatprep.subr.mxu0 0.0
        %473 = vmatpush1.msra.mxu0 0.0
        %474 = vmatprep.subr.mxu0 0.0
        %475 = vmatpush1.msra.mxu0 0.0
        %476 = vmatprep.subr.mxu0 0.0
        %477 = vmatpush1.msra.mxu0 0.0
        %478 = vmatprep.subr.mxu0 0.0
        %479 = vmatpush1.msra.mxu0 0.0
        %480 = vmatprep.subr.mxu0 0.0
        %481 = vmatpush1.msra.mxu0 0.0
        %482 = vmatprep.subr.mxu0 0.0
        %483 = vmatpush1.msra.mxu0 0.0
        %484 = vmatprep.subr.mxu0 0.0
        %485 = vmatpush1.msra.mxu0 0.0
        %486 = vmatprep.subr.mxu0 0.0
        %487 = vmatpush1.msra.mxu0 0.0
        %488 = vmatprep.subr.mxu0 0.0
        %489 = vmatpush1.msra.mxu0 0.0
        %490 = vmatprep.subr.mxu0 0.0
        %491 = vmatpush1.msra.mxu0 0.0
        %492 = vmatprep.subr.mxu0 0.0
        %493 = vmatpush1.msra.mxu0 0.0
        %494 = vmatprep.subr.mxu0 0.0
        %495 = vmatpush1.msra.mxu0 0.0
        %496 = vmatprep.mubr.f32.mxu0 0.0
        %497 = vmatmul.mubr.f32.gmra.mrb[0].mxu0 %v430
        %v498 = vpop.f32.mrb[0].mxu0
        %v499 = vadd.f32 %v426, %v498
        %v500 = vpop.f32.mrb[0].mxu0
        %501 = vdwg.mxu0
        %v502 = vmax.f32 %v499, 0.0
        %s503 = sld [smem:[#allocation4 + %s35]]
        %s504 = smul.u32 %s36, 8
        %v505 = vlaneseq
        %v506 = vand.u32 %v505, 127
        %v507 = vstv %s504
        %v508 = vadd.s32 %v507, %v506
        %v509 = vstv %s503
        %vm510 = vcmp.lt.s32.totalorder %v508, %v509
        %v511 = vsel %vm510, 1, 0
        %v512 = vcvt.s32.f32 %v511
        %v513 = vld [vmem:[#allocation2] sm:$0x1]
        %vm514 = vcmask 64512
        %v516 = vsel %vm514, %v512, 0
        %518 = vmatprep.subr.mxu0 0.0
        %519 = vmatpush1.msra.mxu0 %v502
        %520 = vmatprep.subr.mxu0 0.0
        %521 = vmatpush1.msra.mxu0 0.0
        %522 = vmatprep.subr.mxu0 0.0
        %523 = vmatpush1.msra.mxu0 0.0
        %524 = vmatprep.subr.mxu0 0.0
        %525 = vmatpush1.msra.mxu0 0.0
        %526 = vmatprep.subr.mxu0 0.0
        %527 = vmatpush1.msra.mxu0 0.0
        %528 = vmatprep.subr.mxu0 0.0
        %529 = vmatpush1.msra.mxu0 0.0
        %530 = vmatprep.subr.mxu0 0.0
        %531 = vmatpush1.msra.mxu0 0.0
        %532 = vmatprep.subr.mxu0 0.0
        %533 = vmatpush1.msra.mxu0 0.0
        %534 = vmatprep.subr.mxu0 0.0
        %535 = vmatpush1.msra.mxu0 0.0
        %536 = vmatprep.subr.mxu0 0.0
        %537 = vmatpush1.msra.mxu0 0.0
        %538 = vmatprep.subr.mxu0 0.0
        %539 = vmatpush1.msra.mxu0 0.0
        %540 = vmatprep.subr.mxu0 0.0
        %541 = vmatpush1.msra.mxu0 0.0
        %542 = vmatprep.subr.mxu0 0.0
        %543 = vmatpush1.msra.mxu0 0.0
        %544 = vmatprep.subr.mxu0 0.0
        %545 = vmatpush1.msra.mxu0 0.0
        %546 = vmatprep.subr.mxu0 0.0
        %547 = vmatpush1.msra.mxu0 0.0
        %548 = vmatprep.subr.mxu0 0.0
        %549 = vmatpush1.msra.mxu0 0.0
        %550 = vmatprep.subr.mxu0 0.0
        %551 = vmatpush1.msra.mxu0 0.0
        %552 = vmatprep.subr.mxu0 0.0
        %553 = vmatpush1.msra.mxu0 0.0
        %554 = vmatprep.subr.mxu0 0.0
        %555 = vmatpush1.msra.mxu0 0.0
        %556 = vmatprep.subr.mxu0 0.0
        %557 = vmatpush1.msra.mxu0 0.0
        %558 = vmatprep.subr.mxu0 0.0
        %559 = vmatpush1.msra.mxu0 0.0
        %560 = vmatprep.subr.mxu0 0.0
        %561 = vmatpush1.msra.mxu0 0.0
        %562 = vmatprep.subr.mxu0 0.0
        %563 = vmatpush1.msra.mxu0 0.0
        %564 = vmatprep.subr.mxu0 0.0
        %565 = vmatpush1.msra.mxu0 0.0
        %566 = vmatprep.subr.mxu0 0.0
        %567 = vmatpush1.msra.mxu0 0.0
        %568 = vmatprep.subr.mxu0 0.0
        %569 = vmatpush1.msra.mxu0 0.0
        %570 = vmatprep.subr.mxu0 0.0
        %571 = vmatpush1.msra.mxu0 0.0
        %572 = vmatprep.subr.mxu0 0.0
        %573 = vmatpush1.msra.mxu0 0.0
        %574 = vmatprep.subr.mxu0 0.0
        %575 = vmatpush1.msra.mxu0 0.0
        %576 = vmatprep.subr.mxu0 0.0
        %577 = vmatpush1.msra.mxu0 0.0
        %578 = vmatprep.subr.mxu0 0.0
        %579 = vmatpush1.msra.mxu0 0.0
        %580 = vmatprep.subr.mxu0 0.0
        %581 = vmatpush1.msra.mxu0 0.0
        %582 = vmatprep.mubr.f32.mxu0 0.0
        %583 = vmatmul.mubr.f32.gmra.mrb[0].mxu0 %v516
        %v584 = vpop.f32.mrb[0].mxu0
        %v585 = vadd.f32 0.0, %v584
        %v586 = vpop.f32.mrb[0].mxu0
        %587 = vdwg.mxu0
        %v588 = vadd.f32 %v513, %v585
        %vm589 = vcmask 122880
        %590 = vst.msk [vmem:[#allocation2] sm:$0x1] %vm589, %v588
        %p591 = scmp.eq.s32.totalorder %s36, 1
        // Predicated region
        $region57: #{tpu_custom_call.1} parent=43 // pred_check
          %p592 = pneg %p591
        $region58: #{tpu_custom_call.1} parent=43 // pred_check_branch
          %594 = sbr.rel (%p592) target = $region60
        $region59: #{tpu_custom_call.1} parent=43 // pred_region
          %p595 = scmp.gt.s32.totalorder %s503, 1
          %s596 = scalar_select %p595, %s503, 1
          %s597 = scvt.s32.f32 %s596
          %v598 = vld [vmem:[#allocation2] sm:$0x1]
          %v599 = vstv %s597
          %v600 = vrcp.pop %v599
          %v601 = vmul.f32 %v598, %v600
          %602 = vst.msk [vmem:[%s304] sm:$0x1] %vm589, %v601
        $region60: #{tpu_custom_call.1} parent=43 // pred_fallthru
          _
        %s603 = sand.u32 %s184, 1
        %s604 = scalar_lea.sflag [#allocation7], %s603
        %s605 = sand.u32 %s184, 1
        %s606 = scalar_lea.vmem [#allocation10], %s605
        // Predicated region
        $region61: #{tpu_custom_call.1} parent=43 // pred_check
          %p607 = pneg %p194
        $region62: #{tpu_custom_call.1} parent=43 // pred_check_branch
          %609 = sbr.rel (%p607) target = $region64
        $region63: #{tpu_custom_call.1} parent=43 // pred_region
          %s611 = ssub.s32 16, 16
          %612 = vsyncadd %s604, %s611
          %s613 = smul.addr %s35, 16
          %s614 = scalar_lea.hbm %s7, %s613
          %s616 = sshll.u32 %s606, 4
          %s617 = int_to_ptr.vmem [resolvable:$true] %s616
          %619 = dma.vmem_to_hbm [thread:$0]  %s617, 16, %s614, %s604
        $region64: #{tpu_custom_call.1} parent=43 // pred_fallthru
          _
      $region44: #{tpu_custom_call.1} parent=5 // pred_fallthru
        _
      %p620 = scmp.le.s32.totalorder 2, %s26
      // Predicated region
      $region65: #{tpu_custom_call.1} parent=5 // pred_check
        %p621 = pneg %p620
      $region66: #{tpu_custom_call.1} parent=5 // pred_check_branch
        %623 = sbr.rel (%p621) target = $region68
      $region67: #{tpu_custom_call.1} parent=5 // pred_region
        %s624 = ssub.s32 %s26, 2
        // Predicated region
        $region69: #{tpu_custom_call.1} parent=67 // pred_check
          %p625 = pneg %p200
        $region70: #{tpu_custom_call.1} parent=67 // pred_check_branch
          %627 = sbr.rel (%p625) target = $region72
        $region71: #{tpu_custom_call.1} parent=67 // pred_region
          %s628 = sand.u32 %s185, 1
          %s629 = scalar_lea.sflag [#allocation7], %s628
          %s630 = sand.u32 %s185, 1
          %s631 = scalar_lea.vmem [#allocation10], %s630
          %632 = dma.done %s629, 16
        $region72: #{tpu_custom_call.1} parent=67 // pred_fallthru
          _
      $region68: #{tpu_custom_call.1} parent=5 // pred_fallthru
        _
    $region6: #{tpu_custom_call.1} parent=1 // loop_footer
      %s30 = sadd.s32 1, %s26
    $region7: #{tpu_custom_call.1} parent=1 // loop_footer_branch
      %25 = sbr.rel target = $region3
    $region8: #{tpu_custom_call.1} parent=1 // loop_exit
      _
    %633 = vsyncpa [#allocation6], 1
    %s634 = scalar_lea.sflag [#allocation6], 1
    %635 = vsyncpa %s634, 1
    %636 = vsyncpa [#allocation7], 1
    %s637 = scalar_lea.sflag [#allocation7], 1
    %638 = vsyncpa %s637, 1
    %639 = vsyncpa [#allocation8], 1
    %s640 = scalar_lea.sflag [#allocation8], 1
    %641 = vsyncpa %s640, 1

</llo_original>
